<compile_context>
chip_gen: v5e
topology: v5e:2x2
jax: 0.10.0
libtpu: 0.0.40
codegen_flags: <defaults>
</compile_context>

<pallas_src>
import functools

import jax
import jax.numpy as jnp
from jax.experimental import pallas as pl
from jax.experimental.pallas import tpu as pltpu

LANE = 128                       # TPU vreg lane width
SUBLANE = 8                      # f32 sublane granularity
_VMEM_TILE_BUDGET = 12 * 2**20   # target per-tile footprint (limit gets 2x headroom)


def _round_up(n, m):
    return -(-n // m) * m


def _fused_mlp_kernel(x_ref, *refs, n_layers: int):
    """Entire MLP fused, batch-on-lanes layout.

    x_ref : (in_dim_padded, tb) bf16  -- batch on lanes.
    refs  : (w0, b0, ..., w_{L-1}, b_{L-1}, o_ref);
            w_i (out_i, in_i) bf16, b_i (out_i, 1) f32, o_ref (1, tb) f32.
    All intermediates stay in vregs/VMEM; only the final (1, tb) row hits HBM.
    """
    o_ref = refs[-1]
    h = x_ref[...]                                       # bf16 (in, tb)
    for i in range(n_layers):
        w = refs[2 * i][...]                             # bf16 (out, in)
        b = refs[2 * i + 1][...]                         # f32  (out, 1), lane-broadcast
        z = jnp.dot(w, h, preferred_element_type=jnp.float32) + b   # MXU, f32 acc
        if i < n_layers - 1:
            h = jax.nn.sigmoid(z).astype(jnp.bfloat16)   # EUP transcendental, then bf16
        else:
            h = z                                        # final Linear, no activation
    # Final activation is (8, tb) (out=1 padded to 8 sublanes); store only the real row.
    o_ref[...] = h[: o_ref.shape[0], :].astype(o_ref.dtype)


def init_mlp_params(key, input_size_nl, hidden_sizes):
    """PyTorch-Linear-style uniform(-1/sqrt(fan_in), 1/sqrt(fan_in)) init."""
    dims = [input_size_nl] + list(hidden_sizes) + [1]
    params = []
    for i in range(len(dims) - 1):
        fan_in, fan_out = dims[i], dims[i + 1]
        key, wk, bk = jax.random.split(key, 3)
        bound = 1.0 / jnp.sqrt(jnp.float32(fan_in))
        w = jax.random.uniform(wk, (fan_in, fan_out), jnp.float32, -bound, bound)
        b = jax.random.uniform(bk, (fan_out,), jnp.float32, -bound, bound)
        params.append((w, b))
    return params


def prepare_fused_params(params):
    """One-time layout prep:
       * weights transposed to (out, in) and cast to bf16 (single-pass MXU matmuls),
       * biases to (out, 1) f32,
       * every feature dim zero-padded to a multiple of 8 sublanes (final out=1 -> 8);
         padded rows/cols are zero so real outputs are unchanged.
    """
    dims = [params[0][0].shape[0]] + [w.shape[1] for w, _ in params]
    pdims = [_round_up(d, SUBLANE) for d in dims]
    ws, bs = [], []
    for i, (w, b) in enumerate(params):
        w = jnp.asarray(w, jnp.float32).T                        # (out, in)
        b = jnp.asarray(b, jnp.float32).reshape(-1, 1)           # (out, 1)
        w = jnp.pad(w, ((0, pdims[i + 1] - w.shape[0]), (0, pdims[i] - w.shape[1])))
        b = jnp.pad(b, ((0, pdims[i + 1] - b.shape[0]), (0, 0)))
        ws.append(w.astype(jnp.bfloat16))
        bs.append(b)
    return ws, bs


def _estimate_vmem_bytes(tb, in_dim, ws):
    """Rough per-grid-step VMEM footprint used to size tiles / vmem_limit_bytes."""
    total = 2 * in_dim * tb * 2                      # x block (bf16), double-buffered
    total += 2 * tb * 4                              # (1, tb) f32 output block, double-buffered
    for w in ws:
        out_d, in_d = w.shape
        # tiny weight (bf16) + bias (f32) blocks, lane-padded, 2 buffers each
        total += 2 * (out_d * max(in_d, LANE) * 2 + out_d * LANE * 4)
        # live intermediate activations: f32 pre-activation + bf16 copy
        total += out_d * tb * (4 + 2)
    return total


def mlp_ann_f_forward(x, fused_params, *, batch_tile=8192, out_features=1):
    """Fused forward pass. x: (batch, in_features) f32 -> (batch, out_features) f32."""
    ws, bs = fused_params
    n_layers = len(ws)
    in_pad = ws[0].shape[1]          # sublane-padded input feature dim
    in_true = x.shape[1]
    batch = x.shape[0]

    # --- batch tile selection (multiple of 128 lanes) --------------------------------
    padded128 = _round_up(batch, LANE)
    tb = _round_up(min(batch_tile, padded128), LANE)
    # v7x has 2 TensorCores: keep >= 2 tiles when there is enough work so the "parallel"
    # grid axis feeds both cores (near no-op on v5e/v6e's single TC).
    if padded128 >= 2 * LANE:
        tb = min(tb, _round_up(padded128 // 2, LANE))
    # Shrink until the per-tile footprint fits the VMEM budget (sized so the explicit
    # limit below stays comfortably under v7x's 64 MiB physical VMEM per TC).
    while tb > LANE and _estimate_vmem_bytes(tb, in_pad, ws) > _VMEM_TILE_BUDGET:
        tb = max(LANE, _round_up(tb // 2, LANE))

    padded = _round_up(batch, tb)
    grid = (padded // tb,)
    vmem_limit = int(min(max(2 * _estimate_vmem_bytes(tb, in_pad, ws), 16 * 2**20),
                         48 * 2**20))

    # One fused pad+cast+transpose: x -> lane-dense (in_pad, padded) bf16 slab.
    # (Ideally the upstream producer would emit this layout directly.)
    x_t = jnp.pad(x, ((0, padded - batch), (0, in_pad - in_true))).astype(jnp.bfloat16).T

    flat_wb = []
    in_specs = [pl.BlockSpec((in_pad, tb), lambda i: (0, i))]
    for w, b in zip(ws, bs):
        flat_wb += [w, b]
        # Tiny constant-index blocks: stay VMEM-resident across all grid steps.
        in_specs.append(pl.BlockSpec(w.shape, lambda i: (0, 0)))
        in_specs.append(pl.BlockSpec(b.shape, lambda i: (0, 0)))

    kernel = functools.partial(_fused_mlp_kernel, n_layers=n_layers)
    out = pl.pallas_call(
        kernel,
        out_shape=jax.ShapeDtypeStruct((out_features, padded), jnp.float32),
        grid=grid,
        in_specs=in_specs,
        out_specs=pl.BlockSpec((out_features, tb), lambda i: (0, i)),
        compiler_params=pltpu.CompilerParams(
            dimension_semantics=("parallel",),
            vmem_limit_bytes=vmem_limit,
        ),
    )(x_t, *flat_wb)

    # (out_features, padded) lane-dense slab -> (batch, out_features) like the module.
    return out[:, :batch].T


def mlp_ann_f_reference(x, params):
    """Pure-f32 JAX reference (matches the PyTorch module's math exactly)."""
    out = x
    for i, (w, b) in enumerate(params):
        out = out @ w + b
        if i < len(params) - 1:
            out = jax.nn.sigmoid(out)
    return out


def mlp_ann_f_reference_bf16(x, fused_params):
    """Mirrors the kernel's math (bf16 matmul inputs, f32 accumulate) for a tight check."""
    ws, bs = fused_params
    in_pad = ws[0].shape[1]
    h = jnp.pad(x, ((0, 0), (0, in_pad - x.shape[1]))).astype(jnp.bfloat16).T
    for i, (w, b) in enumerate(zip(ws, bs)):
        z = jnp.dot(w, h, preferred_element_type=jnp.float32) + b
        h = jax.nn.sigmoid(z).astype(jnp.bfloat16) if i < len(ws) - 1 else z
    return h[:1, :].T


if __name__ == "__main__":
    key = jax.random.PRNGKey(0)

    batch = 8
    input_size_nl = 16
    hidden_sizes = [32, 16]

    key, xk, pk = jax.random.split(key, 3)
    x = jax.random.normal(xk, (batch, input_size_nl), jnp.float32)
    params = init_mlp_params(pk, input_size_nl, hidden_sizes)
    fused_params = prepare_fused_params(params)

    fwd = jax.jit(mlp_ann_f_forward)
    out = jax.block_until_ready(fwd(x, fused_params))
    assert out.shape == (batch, 1), out.shape

    # Tight check vs a reference that mirrors the kernel's bf16-matmul / f32-accumulate math.
    ref_q = mlp_ann_f_reference_bf16(x, fused_params)
    assert jnp.allclose(out, ref_q, atol=5e-3, rtol=5e-3), "mismatch vs bf16 reference"

    # Loose check vs the pure-f32 (PyTorch-semantics) reference; slack covers bf16 weights.
    ref = mlp_ann_f_reference(x, params)
    assert jnp.allclose(out, ref, atol=5e-2, rtol=5e-2), "mismatch vs f32 reference"

    print("KERNEL_OK")
</pallas_src>

<mosaic_0001>
module attributes {stable_mosaic.version = 11 : i64} {
  func.func @_fused_mlp_kernel(%arg0: i32, %arg1: memref<16x128xbf16, #tpu.memory_space<vmem>>, %arg2: memref<32x16xbf16, #tpu.memory_space<vmem>>, %arg3: memref<32x1xf32, #tpu.memory_space<vmem>>, %arg4: memref<16x32xbf16, #tpu.memory_space<vmem>>, %arg5: memref<16x1xf32, #tpu.memory_space<vmem>>, %arg6: memref<8x16xbf16, #tpu.memory_space<vmem>>, %arg7: memref<8x1xf32, #tpu.memory_space<vmem>>, %arg8: memref<1x128xf32, #tpu.memory_space<vmem>>) attributes {dimension_semantics = [#tpu.dimension_semantics<parallel>], iteration_bounds = array<i64: 1>, scalar_prefetch = 0 : i64, scratch_operands = 0 : i64, tpu.core_type = #tpu.core_type<tc>, window_params = [{transform_indices = @transform_0, window_bounds = array<i64: 16, 128>}, {pipeline_mode = #tpu.pipeline_mode<synchronous>, transform_indices = @transform_1, window_bounds = array<i64: 32, 16>}, {pipeline_mode = #tpu.pipeline_mode<synchronous>, transform_indices = @transform_2, window_bounds = array<i64: 32, 1>}, {pipeline_mode = #tpu.pipeline_mode<synchronous>, transform_indices = @transform_3, window_bounds = array<i64: 16, 32>}, {pipeline_mode = #tpu.pipeline_mode<synchronous>, transform_indices = @transform_4, window_bounds = array<i64: 16, 1>}, {pipeline_mode = #tpu.pipeline_mode<synchronous>, transform_indices = @transform_5, window_bounds = array<i64: 8, 16>}, {pipeline_mode = #tpu.pipeline_mode<synchronous>, transform_indices = @transform_6, window_bounds = array<i64: 8, 1>}, {transform_indices = @transform_7, window_bounds = array<i64: 1, 128>}]} {
    %c0 = arith.constant 0 : index
    %c0_0 = arith.constant 0 : index
    %0 = vector.load %arg1[%c0, %c0_0] : memref<16x128xbf16, #tpu.memory_space<vmem>>, vector<16x128xbf16>
    %c0_1 = arith.constant 0 : index
    %c0_2 = arith.constant 0 : index
    %1 = vector.load %arg2[%c0_1, %c0_2] : memref<32x16xbf16, #tpu.memory_space<vmem>>, vector<32x16xbf16>
    %c0_3 = arith.constant 0 : index
    %c0_4 = arith.constant 0 : index
    %2 = vector.load %arg3[%c0_3, %c0_4] : memref<32x1xf32, #tpu.memory_space<vmem>>, vector<32x1xf32>
    %cst = arith.constant dense<0.000000e+00> : vector<32x128xf32>
    %3 = tpu.matmul %1, %0, %cst {dimension_numbers = #tpu.dot_dimension_numbers<[1], [0], [0], [1], [0, 0, 1, 1], [], []>} : vector<32x16xbf16>, vector<16x128xbf16>, vector<32x128xf32> -> vector<32x128xf32>
    %4 = vector.broadcast %2 : vector<32x1xf32> to vector<32x128xf32>
    %5 = arith.addf %3, %4 : vector<32x128xf32>
    %6 = arith.negf %5 : vector<32x128xf32>
    %7 = math.exp %6 : vector<32x128xf32>
    %cst_5 = arith.constant 1.000000e+00 : f32
    %8 = vector.broadcast %cst_5 : f32 to vector<32x128xf32>
    %9 = arith.addf %8, %7 : vector<32x128xf32>
    %10 = arith.divf %8, %9 : vector<32x128xf32>
    %11 = arith.truncf %10 : vector<32x128xf32> to vector<32x128xbf16>
    %c0_6 = arith.constant 0 : index
    %c0_7 = arith.constant 0 : index
    %12 = vector.load %arg4[%c0_6, %c0_7] : memref<16x32xbf16, #tpu.memory_space<vmem>>, vector<16x32xbf16>
    %c0_8 = arith.constant 0 : index
    %c0_9 = arith.constant 0 : index
    %13 = vector.load %arg5[%c0_8, %c0_9] : memref<16x1xf32, #tpu.memory_space<vmem>>, vector<16x1xf32>
    %cst_10 = arith.constant dense<0.000000e+00> : vector<16x128xf32>
    %14 = tpu.matmul %12, %11, %cst_10 {dimension_numbers = #tpu.dot_dimension_numbers<[1], [0], [0], [1], [0, 0, 1, 1], [], []>} : vector<16x32xbf16>, vector<32x128xbf16>, vector<16x128xf32> -> vector<16x128xf32>
    %15 = vector.broadcast %13 : vector<16x1xf32> to vector<16x128xf32>
    %16 = arith.addf %14, %15 : vector<16x128xf32>
    %17 = arith.negf %16 : vector<16x128xf32>
    %18 = math.exp %17 : vector<16x128xf32>
    %cst_11 = arith.constant 1.000000e+00 : f32
    %19 = vector.broadcast %cst_11 : f32 to vector<16x128xf32>
    %20 = arith.addf %19, %18 : vector<16x128xf32>
    %21 = arith.divf %19, %20 : vector<16x128xf32>
    %22 = arith.truncf %21 : vector<16x128xf32> to vector<16x128xbf16>
    %c0_12 = arith.constant 0 : index
    %c0_13 = arith.constant 0 : index
    %23 = vector.load %arg6[%c0_12, %c0_13] : memref<8x16xbf16, #tpu.memory_space<vmem>>, vector<8x16xbf16>
    %c0_14 = arith.constant 0 : index
    %c0_15 = arith.constant 0 : index
    %24 = vector.load %arg7[%c0_14, %c0_15] : memref<8x1xf32, #tpu.memory_space<vmem>>, vector<8x1xf32>
    %cst_16 = arith.constant dense<0.000000e+00> : vector<8x128xf32>
    %25 = tpu.matmul %23, %22, %cst_16 {dimension_numbers = #tpu.dot_dimension_numbers<[1], [0], [0], [1], [0, 0, 1, 1], [], []>} : vector<8x16xbf16>, vector<16x128xbf16>, vector<8x128xf32> -> vector<8x128xf32>
    %26 = vector.broadcast %24 : vector<8x1xf32> to vector<8x128xf32>
    %27 = arith.addf %25, %26 : vector<8x128xf32>
    %28 = vector.extract_strided_slice %27 {offsets = [0, 0], sizes = [1, 128], strides = [1, 1]} : vector<8x128xf32> to vector<1x128xf32>
    %c0_17 = arith.constant 0 : index
    %c0_18 = arith.constant 0 : index
    %29 = vector.load %arg8[%c0_17, %c0_18] : memref<1x128xf32, #tpu.memory_space<vmem>>, vector<1x128xf32>
    tpu.vector_store %arg8[%c0_17, %c0_18], %28 {strides = array<i32>} : memref<1x128xf32, #tpu.memory_space<vmem>>, vector<1x128xf32>,
    return
  }
  func.func @transform_0(%arg0: i32) -> (i32, i32) {
    %c0_i32 = arith.constant 0 : i32
    %c0_i32_0 = arith.constant 0 : i32
    return %c0_i32, %arg0 : i32, i32
  }
  func.func @transform_1(%arg0: i32) -> (i32, i32) {
    %c0_i32 = arith.constant 0 : i32
    %c0_i32_0 = arith.constant 0 : i32
    %c0_i32_1 = arith.constant 0 : i32
    return %c0_i32, %c0_i32_0 : i32, i32
  }
  func.func @transform_2(%arg0: i32) -> (i32, i32) {
    %c0_i32 = arith.constant 0 : i32
    %c0_i32_0 = arith.constant 0 : i32
    %c0_i32_1 = arith.constant 0 : i32
    return %c0_i32, %c0_i32_0 : i32, i32
  }
  func.func @transform_3(%arg0: i32) -> (i32, i32) {
    %c0_i32 = arith.constant 0 : i32
    %c0_i32_0 = arith.constant 0 : i32
    %c0_i32_1 = arith.constant 0 : i32
    return %c0_i32, %c0_i32_0 : i32, i32
  }
  func.func @transform_4(%arg0: i32) -> (i32, i32) {
    %c0_i32 = arith.constant 0 : i32
    %c0_i32_0 = arith.constant 0 : i32
    %c0_i32_1 = arith.constant 0 : i32
    return %c0_i32, %c0_i32_0 : i32, i32
  }
  func.func @transform_5(%arg0: i32) -> (i32, i32) {
    %c0_i32 = arith.constant 0 : i32
    %c0_i32_0 = arith.constant 0 : i32
    %c0_i32_1 = arith.constant 0 : i32
    return %c0_i32, %c0_i32_0 : i32, i32
  }
  func.func @transform_6(%arg0: i32) -> (i32, i32) {
    %c0_i32 = arith.constant 0 : i32
    %c0_i32_0 = arith.constant 0 : i32
    %c0_i32_1 = arith.constant 0 : i32
    return %c0_i32, %c0_i32_0 : i32, i32
  }
  func.func @transform_7(%arg0: i32) -> (i32, i32) {
    %c0_i32 = arith.constant 0 : i32
    %c0_i32_0 = arith.constant 0 : i32
    return %c0_i32, %arg0 : i32, i32
  }
}

</mosaic_0001>

<llo_original>
// kernel: mlp_ann_f_forward.1
$region0: #{mlp_ann_f_forward.1}
  #allocation0 [shape = 'u32[]', space=smem, size = 0x4, offset = 0x4, fixed_abs, tag = 'smem constant byte address 0x4 - core index']
  #allocation1 [shape = 'u32[72,128]{1,0:T(1,128)}', space=vmem, size = 0x9000, scoped, tag = 'internal scratch']
  %s0 = inlined_call_operand.vmem [shape: bf16[16,128], index: 0, kind: input, shape index: {}]
  %s1 = inlined_call_operand.vmem [shape: bf16[32,16], index: 1, kind: input, shape index: {}]
  %s2 = inlined_call_operand.vmem [shape: f32[32,1], index: 2, kind: input, shape index: {}]
  %s3 = inlined_call_operand.vmem [shape: bf16[16,32], index: 3, kind: input, shape index: {}]
  %s4 = inlined_call_operand.vmem [shape: f32[16,1], index: 4, kind: input, shape index: {}]
  %s5 = inlined_call_operand.vmem [shape: bf16[8,16], index: 5, kind: input, shape index: {}]
  %s6 = inlined_call_operand.vmem [shape: f32[8,1], index: 6, kind: input, shape index: {}]
  %s7 = inlined_call_operand.vmem [shape: f32[1,128], index: 7, kind: output, shape index: {}]
  %s8 = sld [smem:[#allocation0]]
  $region38: #{mlp_ann_f_forward.1} parent=0
    _
  %s10 = ssub.s32 1, %s8
  %s11 = scalar_select 0, %s10, %s8
  // Predicated region
  $region2: #{mlp_ann_f_forward.1} parent=0 // pred_check
    _
  $region3: #{mlp_ann_f_forward.1} parent=0 // pred_check_branch
    %13 = sbr.rel (0) target = $region5
  $region4: #{mlp_ann_f_forward.1} parent=0 // pred_region
    _
  $region5: #{mlp_ann_f_forward.1} parent=0 // pred_fallthru
    _
  // Predicated region
  $region6: #{mlp_ann_f_forward.1} parent=0 // pred_check
    _
  $region7: #{mlp_ann_f_forward.1} parent=0 // pred_check_branch
    %15 = sbr.rel (0) target = $region9
  $region8: #{mlp_ann_f_forward.1} parent=0 // pred_region
    _
  $region9: #{mlp_ann_f_forward.1} parent=0 // pred_fallthru
    _
  // Predicated region
  $region10: #{mlp_ann_f_forward.1} parent=0 // pred_check
    _
  $region11: #{mlp_ann_f_forward.1} parent=0 // pred_check_branch
    %17 = sbr.rel (0) target = $region13
  $region12: #{mlp_ann_f_forward.1} parent=0 // pred_region
    _
  $region13: #{mlp_ann_f_forward.1} parent=0 // pred_fallthru
    _
  // Predicated region
  $region14: #{mlp_ann_f_forward.1} parent=0 // pred_check
    _
  $region15: #{mlp_ann_f_forward.1} parent=0 // pred_check_branch
    %19 = sbr.rel (0) target = $region17
  $region16: #{mlp_ann_f_forward.1} parent=0 // pred_region
    _
  $region17: #{mlp_ann_f_forward.1} parent=0 // pred_fallthru
    _
  // Predicated region
  $region18: #{mlp_ann_f_forward.1} parent=0 // pred_check
    _
  $region19: #{mlp_ann_f_forward.1} parent=0 // pred_check_branch
    %21 = sbr.rel (0) target = $region21
  $region20: #{mlp_ann_f_forward.1} parent=0 // pred_region
    _
  $region21: #{mlp_ann_f_forward.1} parent=0 // pred_fallthru
    _
  // Predicated region
  $region22: #{mlp_ann_f_forward.1} parent=0 // pred_check
    _
  $region23: #{mlp_ann_f_forward.1} parent=0 // pred_check_branch
    %23 = sbr.rel (0) target = $region25
  $region24: #{mlp_ann_f_forward.1} parent=0 // pred_region
    _
  $region25: #{mlp_ann_f_forward.1} parent=0 // pred_fallthru
    _
  // Predicated region
  $region26: #{mlp_ann_f_forward.1} parent=0 // pred_check
    _
  $region27: #{mlp_ann_f_forward.1} parent=0 // pred_check_branch
    %25 = sbr.rel (0) target = $region29
  $region28: #{mlp_ann_f_forward.1} parent=0 // pred_region
    _
  $region29: #{mlp_ann_f_forward.1} parent=0 // pred_fallthru
    _
  %v27 = vld [vmem:[%s0] sm:$0xf]
  %v28 = vld [vmem:[%s0 + $0x4] sm:$0xf]
  %v29 = vld [vmem:[%s1] sm:$0xf]
  %v30 = vld [vmem:[%s1 + $0x4] sm:$0xf]
  %v31 = vld [vmem:[%s1 + $0x8] sm:$0xf]
  %v32 = vld [vmem:[%s1 + $0xc] sm:$0xf]
  %v33 = vld [vmem:[%s2] sm:$0xff]
  %v34 = vld [vmem:[%s2 + $0x8] sm:$0xff]
  %v35 = vld [vmem:[%s2 + $0x10] sm:$0xff]
  %v36 = vld [vmem:[%s2 + $0x18] sm:$0xff]
  %38 = vset.pattern.permute.xlu0 0
  %39 = vperm.xlu0 %38, %v33
  %v40 = vpop.permute.xlu0 %39
  %43 = vset.pattern.permute.xlu0 0
  %44 = vperm.xlu0 %43, %v34
  %v45 = vpop.permute.xlu0 %44
  %48 = vset.pattern.permute.xlu0 0
  %49 = vperm.xlu0 %48, %v35
  %v50 = vpop.permute.xlu0 %49
  %53 = vset.pattern.permute.xlu0 0
  %54 = vperm.xlu0 %53, %v36
  %v55 = vpop.permute.xlu0 %54
  %v61 = vunpack.c.l.b16 %v29
  %v62 = vunpack.c.l.b16 %v30
  %v63 = vunpack.c.l.b16 %v31
  %v64 = vunpack.c.l.b16 %v32
  %v65 = vpack.c.b16 %v62, %v61
  %v66 = vpack.c.b16 %v64, %v63
  %v69 = vunpack.c.l.b16 %v27
  %v70 = vunpack.c.l.b16 %v28
  %v71 = vpack.c.b16 %v70, %v69
  %vm73 = vcmask 130048
  %v75 = vsel %vm73, %v65, 0
  %v78 = vsel %vm73, %v66, 0
  %80 = vmatpush.bf16.msra.mxu0 0
  %81 = vmatpush.bf16.msra.mxu0 0
  %82 = vmatpush.bf16.msra.mxu0 0
  %83 = vmatpush.bf16.msra.mxu0 0
  %84 = vmatpush.bf16.msra.mxu0 0
  %85 = vmatpush.bf16.msra.mxu0 0
  %86 = vmatpush.bf16.msra.mxu0 0
  %87 = vmatpush.bf16.msra.mxu0 %v71
  %88 = vmatmul.bf16.gmra.mxu0 %v75
  %v89 = vpop.f32.mrf.mxu0
  %v90 = vadd.f32 %v40, %v89
  %v91 = vpop.f32.mrf.mxu0
  %v92 = vadd.f32 %v45, %v91
  %93 = vmatmul.bf16.gmra.mxu0 %v78
  %v94 = vpop.f32.mrf.mxu0
  %v95 = vadd.f32 %v50, %v94
  %v96 = vpop.f32.mrf.mxu0
  %v97 = vadd.f32 %v55, %v96
  %98 = vdwg.mxu0
  %v99 = vxor.u32 %v90, 2147483648
  %v100 = vxor.u32 %v92, 2147483648
  %v101 = vxor.u32 %v95, 2147483648
  %v102 = vxor.u32 %v97, 2147483648
  %v103 = vmul.f32 %v99, 1.442695
  %v104 = vpow.pop %v103
  %v105 = vmul.f32 %v100, 1.442695
  %v106 = vpow.pop %v105
  %v107 = vmul.f32 %v101, 1.442695
  %v108 = vpow.pop %v107
  %v109 = vmul.f32 %v102, 1.442695
  %v110 = vpow.pop %v109
  %v111 = vadd.f32 %v104, 1.0
  %v112 = vadd.f32 %v106, 1.0
  %v113 = vadd.f32 %v108, 1.0
  %v114 = vadd.f32 %v110, 1.0
  %v115 = vrcp.pop %v111
  %v116 = vmul.f32 %v111, %v115
  %v117 = vsub.f32 1.0, %v116
  %v118 = vmul.f32 %v115, %v117
  %v119 = vadd.f32 %v115, %v118
  %vm120 = vweird.f32 %v111
  %vm121 = vweird.f32 %v115
  %vm122 = vmor %vm120, %vm121
  %v123 = vsel %vm122, %v115, %v119
  %v124 = vand.u32 2147483647, %v111
  %vm125 = vcmp.eq.f32.partialorder %v124, 8.507059e+37
  %v126 = vand.u32 %v111, 2147483648
  %v127 = vor.u32 1.1754944e-38, %v126
  %v128 = vsel %vm125, %v127, %v123
  %v129 = vmul.f32 1.0, %v128
  %v130 = vrcp.pop %v112
  %v131 = vmul.f32 %v112, %v130
  %v132 = vsub.f32 1.0, %v131
  %v133 = vmul.f32 %v130, %v132
  %v134 = vadd.f32 %v130, %v133
  %vm135 = vweird.f32 %v112
  %vm136 = vweird.f32 %v130
  %vm137 = vmor %vm135, %vm136
  %v138 = vsel %vm137, %v130, %v134
  %v139 = vand.u32 2147483647, %v112
  %vm140 = vcmp.eq.f32.partialorder %v139, 8.507059e+37
  %v141 = vand.u32 %v112, 2147483648
  %v142 = vor.u32 1.1754944e-38, %v141
  %v143 = vsel %vm140, %v142, %v138
  %v144 = vmul.f32 1.0, %v143
  %v145 = vrcp.pop %v113
  %v146 = vmul.f32 %v113, %v145
  %v147 = vsub.f32 1.0, %v146
  %v148 = vmul.f32 %v145, %v147
  %v149 = vadd.f32 %v145, %v148
  %vm150 = vweird.f32 %v113
  %vm151 = vweird.f32 %v145
  %vm152 = vmor %vm150, %vm151
  %v153 = vsel %vm152, %v145, %v149
  %v154 = vand.u32 2147483647, %v113
  %vm155 = vcmp.eq.f32.partialorder %v154, 8.507059e+37
  %v156 = vand.u32 %v113, 2147483648
  %v157 = vor.u32 1.1754944e-38, %v156
  %v158 = vsel %vm155, %v157, %v153
  %v159 = vmul.f32 1.0, %v158
  %v160 = vrcp.pop %v114
  %v161 = vmul.f32 %v114, %v160
  %v162 = vsub.f32 1.0, %v161
  %v163 = vmul.f32 %v160, %v162
  %v164 = vadd.f32 %v160, %v163
  %vm165 = vweird.f32 %v114
  %vm166 = vweird.f32 %v160
  %vm167 = vmor %vm165, %vm166
  %v168 = vsel %vm167, %v160, %v164
  %v169 = vand.u32 2147483647, %v114
  %vm170 = vcmp.eq.f32.partialorder %v169, 8.507059e+37
  %v171 = vand.u32 %v114, 2147483648
  %v172 = vor.u32 1.1754944e-38, %v171
  %v173 = vsel %vm170, %v172, %v168
  %v174 = vmul.f32 1.0, %v173
  %v175 = vpack.c.bf16 %v144, %v129
  %v176 = vpack.c.bf16 %v174, %v159
  %v177 = vld [vmem:[%s3] sm:$0xf]
  %v178 = vld [vmem:[%s3 + $0x4] sm:$0xf]
  %v179 = vld [vmem:[%s4] sm:$0xff]
  %v180 = vld [vmem:[%s4 + $0x8] sm:$0xff]
  %182 = vset.pattern.permute.xlu0 0
  %183 = vperm.xlu0 %182, %v179
  %v184 = vpop.permute.xlu0 %183
  %187 = vset.pattern.permute.xlu0 0
  %188 = vperm.xlu0 %187, %v180
  %v189 = vpop.permute.xlu0 %188
  %v193 = vunpack.c.l.b16 %v177
  %v194 = vunpack.c.l.b16 %v178
  %v195 = vpack.c.b16 %v194, %v193
  %vm196 = vcmask 261120
  %v198 = vsel %vm196, %v195, 0
  %200 = vmatpush.bf16.msra.mxu0 0
  %201 = vmatpush.bf16.msra.mxu0 0
  %202 = vmatpush.bf16.msra.mxu0 0
  %203 = vmatpush.bf16.msra.mxu0 0
  %204 = vmatpush.bf16.msra.mxu0 0
  %205 = vmatpush.bf16.msra.mxu0 0
  %206 = vmatpush.bf16.msra.mxu0 %v176
  %207 = vmatpush.bf16.msra.mxu0 %v175
  %208 = vmatmul.bf16.gmra.mxu0 %v198
  %v209 = vpop.f32.mrf.mxu0
  %v210 = vadd.f32 %v184, %v209
  %v211 = vpop.f32.mrf.mxu0
  %v212 = vadd.f32 %v189, %v211
  %213 = vdwg.mxu0
  %v214 = vxor.u32 %v210, 2147483648
  %v215 = vxor.u32 %v212, 2147483648
  %v216 = vmul.f32 %v214, 1.442695
  %v217 = vpow.pop %v216
  %v218 = vmul.f32 %v215, 1.442695
  %v219 = vpow.pop %v218
  %v220 = vadd.f32 %v217, 1.0
  %v221 = vadd.f32 %v219, 1.0
  %v222 = vrcp.pop %v220
  %v223 = vmul.f32 %v220, %v222
  %v224 = vsub.f32 1.0, %v223
  %v225 = vmul.f32 %v222, %v224
  %v226 = vadd.f32 %v222, %v225
  %vm227 = vweird.f32 %v220
  %vm228 = vweird.f32 %v222
  %vm229 = vmor %vm227, %vm228
  %v230 = vsel %vm229, %v222, %v226
  %v231 = vand.u32 2147483647, %v220
  %vm232 = vcmp.eq.f32.partialorder %v231, 8.507059e+37
  %v233 = vand.u32 %v220, 2147483648
  %v234 = vor.u32 1.1754944e-38, %v233
  %v235 = vsel %vm232, %v234, %v230
  %v236 = vmul.f32 1.0, %v235
  %v237 = vrcp.pop %v221
  %v238 = vmul.f32 %v221, %v237
  %v239 = vsub.f32 1.0, %v238
  %v240 = vmul.f32 %v237, %v239
  %v241 = vadd.f32 %v237, %v240
  %vm242 = vweird.f32 %v221
  %vm243 = vweird.f32 %v237
  %vm244 = vmor %vm242, %vm243
  %v245 = vsel %vm244, %v237, %v241
  %v246 = vand.u32 2147483647, %v221
  %vm247 = vcmp.eq.f32.partialorder %v246, 8.507059e+37
  %v248 = vand.u32 %v221, 2147483648
  %v249 = vor.u32 1.1754944e-38, %v248
  %v250 = vsel %vm247, %v249, %v245
  %v251 = vmul.f32 1.0, %v250
  %v252 = vpack.c.bf16 %v251, %v236
  %v253 = vld [vmem:[%s5] sm:$0xf]
  %v254 = vld [vmem:[%s6] sm:$0xff]
  %256 = vset.pattern.permute.xlu0 0
  %257 = vperm.xlu0 %256, %v254
  %v258 = vpop.permute.xlu0 %257
  %v261 = vsel %vm73, %v253, 0
  %263 = vmatpush.bf16.msra.mxu0 0
  %264 = vmatpush.bf16.msra.mxu0 0
  %265 = vmatpush.bf16.msra.mxu0 0
  %266 = vmatpush.bf16.msra.mxu0 0
  %267 = vmatpush.bf16.msra.mxu0 0
  %268 = vmatpush.bf16.msra.mxu0 0
  %269 = vmatpush.bf16.msra.mxu0 0
  %270 = vmatpush.bf16.msra.mxu0 %v252
  %271 = vmatmul.bf16.gmra.mxu0 %v261
  %v272 = vpop.f32.mrf.mxu0
  %v273 = vadd.f32 %v258, %v272
  %v274 = vpop.f32.mrf.mxu0
  %275 = vdwg.mxu0
  %276 = vst [vmem:[%s7] sm:$0x1] %v273
  // Predicated region
  $region30: #{mlp_ann_f_forward.1} parent=0 // pred_check
    _
  $region31: #{mlp_ann_f_forward.1} parent=0 // pred_check_branch
    %278 = sbr.rel (0) target = $region33
  $region32: #{mlp_ann_f_forward.1} parent=0 // pred_region
    _
  $region33: #{mlp_ann_f_forward.1} parent=0 // pred_fallthru
    _
  // Predicated region
  $region34: #{mlp_ann_f_forward.1} parent=0 // pred_check
    _
  $region35: #{mlp_ann_f_forward.1} parent=0 // pred_check_branch
    %280 = sbr.rel (0) target = $region37
  $region36: #{mlp_ann_f_forward.1} parent=0 // pred_region
    _
  $region37: #{mlp_ann_f_forward.1} parent=0 // pred_fallthru
    _

</llo_original>
